<compile_context>
chip_gen: v7x
topology: tpu7x:2x2x1
jax: 0.10.0
libtpu: 0.0.40
codegen_flags: <defaults>
</compile_context>

<pallas_src>
import jax
import jax.numpy as jnp
from jax.experimental import pallas as pl
from jax.experimental.pallas import tpu as pltpu


def _pwdp_kernel(x_ref, k_ref, o_ref):
    # x_ref: (c, T), k_ref: (cout, c), o_ref: (cout, T)
    o_ref[...] = jnp.dot(
        k_ref[...], x_ref[...], preferred_element_type=jnp.float32
    ).astype(o_ref.dtype)


def _round_down_128(v):
    return (v // 128) * 128


def _round_up_128(v):
    return ((v + 127) // 128) * 128


def _vmem_budget_bytes():
    # ~80% of physical per-core VMEM: ~51 MiB on v7x (64 MiB parts),
    # ~102 MiB on v5e/v6e (128 MiB parts). Leaves headroom for compiler scratch.
    try:
        cap = int(pltpu.get_tpu_info().vmem_capacity_bytes)
    except Exception:  # conservative fallback if the query is unavailable
        cap = 64 << 20
    return max(32 << 20, int(cap * 0.8))


def pixel_wise_dot_product(x, K, *, target_tile_bytes=2 << 20):
    """x: (n, c, h, w), K: (n, cout, c) -> (n, cout, h, w)."""
    n, c, h, w = x.shape
    _, cout, ck = K.shape
    assert c == ck, (
        "Number of channels in x and Embedding dimension (at dim 2) of K matrix must match"
    )
    hw = h * w
    itemsize = jnp.dtype(x.dtype).itemsize

    # ---- Spatial tile width T (lanes), sized by bytes per step ---------------
    # Aim for ~target_tile_bytes of x per grid step so DMA time dominates the
    # ~0.35us per-step overhead; keep T a multiple of 128 for lane-dense stores.
    hw_128 = _round_up_128(hw)
    T = _round_down_128(max(128, target_tile_bytes // max(1, c * itemsize)))
    T = max(128, min(T, hw_128))

    # v7x megacore: with a single batch, keep >= 2 spatial tiles so both
    # TensorCores get work.
    if n == 1 and hw_128 > 128:
        T = min(T, max(128, _round_down_128(hw_128 // 2)))

    # Shrink T until the double-buffered per-step footprint fits the budget.
    budget = _vmem_budget_bytes()

    def footprint(t):
        # double-buffered: x tile + out tile + K block
        return 2 * itemsize * (c * t + cout * t + cout * c)

    while T > 128 and footprint(T) > budget:
        T = max(128, _round_down_128(T // 2))

    num_t = pl.cdiv(hw, T)

    # No host-side padding or output slicing: Pallas masks the ragged last
    # spatial block (only the final tile uses partial stores), so x and y each
    # make exactly one pass over HBM.
    x_flat = x.reshape(n, c, hw)

    vmem_limit = int(min(budget, max(32 << 20, 2 * footprint(T))))

    cost = pl.CostEstimate(
        flops=2 * n * cout * c * hw,
        transcendentals=0,
        bytes_accessed=itemsize * (n * c * hw + n * cout * c + n * cout * hw),
    )

    out_flat = pl.pallas_call(
        _pwdp_kernel,
        out_shape=jax.ShapeDtypeStruct((n, cout, hw), x.dtype),
        grid_spec=pltpu.PrefetchScalarGridSpec(
            num_scalar_prefetch=0,
            # Batch outer, spatial tiles inner: K's block index is constant
            # across the inner axis, so K is DMA'd once per batch.
            grid=(n, num_t),
            in_specs=[
                pl.BlockSpec((None, c, T), lambda b, t: (b, 0, t)),     # x: (c, T)
                pl.BlockSpec((None, cout, c), lambda b, t: (b, 0, 0)),  # K: (cout, c)
            ],
            out_specs=pl.BlockSpec((None, cout, T), lambda b, t: (b, 0, t)),
        ),
        compiler_params=pltpu.CompilerParams(
            dimension_semantics=("parallel", "parallel"),
            vmem_limit_bytes=vmem_limit,
        ),
        cost_estimate=cost,
    )(x_flat, K)

    # TODO(synk): for cout >~ 256, add a cout grid axis as grid=(n, hw_tiles,
    # cout_tiles) with x's index_map constant over the cout axis (x tile stays
    # resident while K blocks rotate); align the cout tile to 256 on v6e/v7x
    # and 128 on v5e. Optionally cast x/K to bf16 (f32 accumulation) if the
    # caller's accuracy budget allows — halves HBM traffic in the mem-bound regime.
    return out_flat.reshape(n, cout, h, w)


if __name__ == "__main__":
    key = jax.random.PRNGKey(0)
    kx, kk = jax.random.split(key)

    n, c, h, w = 2, 4, 16, 16
    cout = 8

    x = jax.random.normal(kx, (n, c, h, w), dtype=jnp.float32)
    K = jax.random.normal(kk, (n, cout, c), dtype=jnp.float32)

    y = pixel_wise_dot_product(x, K)
    jax.block_until_ready(y)

    # reference check (plain JAX)
    y_ref = jnp.einsum("nchw,noc->nohw", x, K)
    assert y.shape == (n, cout, h, w)
    assert jnp.allclose(y, y_ref, atol=1e-5, rtol=1e-5), "mismatch vs reference"

    print("KERNEL_OK")
</pallas_src>

<mosaic_0001>
module attributes {stable_mosaic.version = 11 : i64} {
  func.func @_pwdp_kernel(%arg0: i32, %arg1: i32, %arg2: memref<1x4x256xf32, #tpu.memory_space<vmem>>, %arg3: memref<1x8x4xf32, #tpu.memory_space<vmem>>, %arg4: memref<1x8x256xf32, #tpu.memory_space<vmem>>) attributes {dimension_semantics = [#tpu.dimension_semantics<parallel>, #tpu.dimension_semantics<parallel>], iteration_bounds = array<i64: 2, 1>, scalar_prefetch = 0 : i64, scratch_operands = 0 : i64, tpu.core_type = #tpu.core_type<tc>, window_params = [{transform_indices = @transform_0, window_bounds = array<i64: 1, 4, 256>}, {transform_indices = @transform_1, window_bounds = array<i64: 1, 8, 4>}, {transform_indices = @transform_2, window_bounds = array<i64: 1, 8, 256>}]} {
    %c0 = arith.constant 0 : index
    %c0_0 = arith.constant 0 : index
    %c0_1 = arith.constant 0 : index
    %0 = vector.load %arg3[%c0, %c0_0, %c0_1] : memref<1x8x4xf32, #tpu.memory_space<vmem>>, vector<1x8x4xf32>
    %1 = vector.shape_cast %0 : vector<1x8x4xf32> to vector<8x4xf32>
    %c0_2 = arith.constant 0 : index
    %c0_3 = arith.constant 0 : index
    %c0_4 = arith.constant 0 : index
    %2 = vector.load %arg2[%c0_2, %c0_3, %c0_4] : memref<1x4x256xf32, #tpu.memory_space<vmem>>, vector<1x4x256xf32>
    %3 = vector.shape_cast %2 : vector<1x4x256xf32> to vector<4x256xf32>
    %cst = arith.constant dense<0.000000e+00> : vector<8x256xf32>
    %4 = tpu.matmul %1, %3, %cst {dimension_numbers = #tpu.dot_dimension_numbers<[1], [0], [0], [1], [0, 0, 1, 1], [], []>} : vector<8x4xf32>, vector<4x256xf32>, vector<8x256xf32> -> vector<8x256xf32>
    %c0_5 = arith.constant 0 : index
    %c0_6 = arith.constant 0 : index
    %c0_7 = arith.constant 0 : index
    %5 = vector.load %arg4[%c0_5, %c0_6, %c0_7] : memref<1x8x256xf32, #tpu.memory_space<vmem>>, vector<1x8x256xf32>
    %6 = vector.shape_cast %5 : vector<1x8x256xf32> to vector<8x256xf32>
    %7 = vector.shape_cast %4 : vector<8x256xf32> to vector<1x8x256xf32>
    tpu.vector_store %arg4[%c0_5, %c0_6, %c0_7], %7 {strides = array<i32>} : memref<1x8x256xf32, #tpu.memory_space<vmem>>, vector<1x8x256xf32>,
    return
  }
  func.func @transform_0(%arg0: i32, %arg1: i32) -> (i32, i32, i32) {
    %c0_i32 = arith.constant 0 : i32
    %c0_i32_0 = arith.constant 0 : i32
    return %arg0, %c0_i32, %arg1 : i32, i32, i32
  }
  func.func @transform_1(%arg0: i32, %arg1: i32) -> (i32, i32, i32) {
    %c0_i32 = arith.constant 0 : i32
    %c0_i32_0 = arith.constant 0 : i32
    %c0_i32_1 = arith.constant 0 : i32
    return %arg0, %c0_i32, %c0_i32_0 : i32, i32, i32
  }
  func.func @transform_2(%arg0: i32, %arg1: i32) -> (i32, i32, i32) {
    %c0_i32 = arith.constant 0 : i32
    %c0_i32_0 = arith.constant 0 : i32
    return %arg0, %c0_i32, %arg1 : i32, i32, i32
  }
}

</mosaic_0001>

<llo_original>
// kernel: tpu_custom_call.1
$region0: #{tpu_custom_call.1}
  #allocation0 [shape = 'u32[]', space=smem, size = 0x4, offset = 0x4, fixed_abs, tag = 'smem constant byte address 0x4 - core index']
  #allocation1 [shape = 'u32[144,128]{1,0:T(1,128)}', space=vmem, size = 0x12000, scoped, tag = 'internal scratch']
  %s0 = inlined_call_operand.vmem [shape: f32[2,4,256], index: 0, kind: input, shape index: {}]
  %s1 = inlined_call_operand.vmem [shape: f32[2,8,4], index: 1, kind: input, shape index: {}]
  %s2 = inlined_call_operand.hbm [shape: f32[2,8,256], index: 2, kind: output, shape index: {}]
  %s3 = sld [smem:[#allocation0]]
  $region41: #{tpu_custom_call.1} parent=0
    _
  %s5 = ssub.s32 1, %s3
  %s6 = scalar_select 0, %s5, %s3
  $region1: #{tpu_custom_call.1} parent=0
    #allocation2 [shape = 'u8[16384]{0}', space=vmem, size = 0x4000, scoped, tag = 'output window, operand 0']
    #allocation3 [shape = 's32[2]{0}', space=sflag, size = 0x8, scoped, tag = 'scoped memory for tpu_custom_call.1']
    %7 = vsyncpa [#allocation3], 0
    %s8 = scalar_lea.sflag [#allocation3], 1
    %9 = vsyncpa %s8, 0
    loop: start=0, step=1, limit=4
    $region2: #{tpu_custom_call.1} parent=1 // loop_pre_header
      _
    $region3: #{tpu_custom_call.1} parent=1 // loop_header
      %s11 = sphi 0, %s15
      %p12 = scmp.ge.s32.totalorder %s11, 4
      %s18 = sphi 0, %s30
      %s19 = sphi 0, %s26
      %s20 = sphi 0, %s18
      %s21 = sphi 0, %s19
      %s22 = sphi 0, %s20
      %s23 = sphi 0, %s21
      %s35 = sphi 0, %s37
      %s38 = sphi 0, %s35
      %s39 = sphi 0, %s38
      %s55 = sphi 0, %s39
      %s61 = sphi 0, %s63
      %s64 = sphi 0, %s61
      %s65 = sphi 0, %s64
      %s81 = sphi 0, %s65
      %s89 = sphi 0, %s91
      %s92 = sphi 0, %s89
      %s93 = sphi 0, %s92
      %s109 = sphi 0, %s93
    $region4: #{tpu_custom_call.1} parent=1 // loop_header_branch
      %14 = sbr.rel (%p12) target = $region8
    $region5: #{tpu_custom_call.1} parent=1 // loop_body
      %s16 = ssub.s32 %s11, 1
      %s17 = ssub.s32 %s11, 2
      %s24 = sadd.s32 1, %s19
      %p25 = scmp.ge.s32.totalorder %s24, 1
      %s26 = scalar_select %p25, 0, %s24
      %s27 = sadd.s32 1, %s18
      %s28 = scalar_select %p25, %s27, %s18
      %p29 = scmp.ge.s32.totalorder %s28, 2
      %s30 = scalar_select %p29, 0, %s28
      %s31 = ssub.s32 %s18, %s30
      %s32 = ssub.s32 %s19, %s26
      %s33 = sor.u32 %s31, %s32
      %p34 = scmp.eq.s32.totalorder %s33, 0
      %s36 = sadd.s32 %s35, 1
      %s37 = scalar_select %p34, %s35, %s36
      %p40 = pneg %p34
      %p41 = scmp.eq.s32.totalorder %s11, 1
      %p42 = por %p40, %p41
      %p43 = scmp.ne.s32.totalorder %s35, %s38
      %p44 = scmp.eq.s32.totalorder %s11, 0
      %p45 = por %p43, %p44
      %p46 = scmp.ne.s32.totalorder %s35, %s38
      %p47 = scmp.eq.s32.totalorder %s16, 1
      %p48 = por %p46, %p47
      %p49 = scmp.ne.s32.totalorder %s38, %s39
      %p50 = scmp.eq.s32.totalorder %s16, 0
      %p51 = por %p49, %p50
      %p52 = scmp.ne.s32.totalorder %s38, %s39
      %p53 = scmp.eq.s32.totalorder %s17, 1
      %p54 = por %p52, %p53
      %p56 = scmp.ne.s32.totalorder %s39, %s55
      %p57 = scmp.eq.s32.totalorder %s17, 0
      %p58 = por %p56, %p57
      %s59 = ssub.s32 %s18, %s30
      %p60 = scmp.eq.s32.totalorder %s59, 0
      %s62 = sadd.s32 %s61, 1
      %s63 = scalar_select %p60, %s61, %s62
      %p66 = pneg %p60
      %p67 = scmp.eq.s32.totalorder %s11, 1
      %p68 = por %p66, %p67
      %p69 = scmp.ne.s32.totalorder %s61, %s64
      %p70 = scmp.eq.s32.totalorder %s11, 0
      %p71 = por %p69, %p70
      %p72 = scmp.ne.s32.totalorder %s61, %s64
      %p73 = scmp.eq.s32.totalorder %s16, 1
      %p74 = por %p72, %p73
      %p75 = scmp.ne.s32.totalorder %s64, %s65
      %p76 = scmp.eq.s32.totalorder %s16, 0
      %p77 = por %p75, %p76
      %p78 = scmp.ne.s32.totalorder %s64, %s65
      %p79 = scmp.eq.s32.totalorder %s17, 1
      %p80 = por %p78, %p79
      %p82 = scmp.ne.s32.totalorder %s65, %s81
      %p83 = scmp.eq.s32.totalorder %s17, 0
      %p84 = por %p82, %p83
      %s85 = ssub.s32 %s18, %s30
      %s86 = ssub.s32 %s19, %s26
      %s87 = sor.u32 %s85, %s86
      %p88 = scmp.eq.s32.totalorder %s87, 0
      %s90 = sadd.s32 %s89, 1
      %s91 = scalar_select %p88, %s89, %s90
      %p94 = pneg %p88
      %p95 = scmp.eq.s32.totalorder %s11, 1
      %p96 = por %p94, %p95
      %p97 = scmp.ne.s32.totalorder %s89, %s92
      %p98 = scmp.eq.s32.totalorder %s11, 0
      %p99 = por %p97, %p98
      %p100 = scmp.ne.s32.totalorder %s89, %s92
      %p101 = scmp.eq.s32.totalorder %s16, 1
      %p102 = por %p100, %p101
      %p103 = scmp.ne.s32.totalorder %s92, %s93
      %p104 = scmp.eq.s32.totalorder %s16, 0
      %p105 = por %p103, %p104
      %p106 = scmp.ne.s32.totalorder %s92, %s93
      %p107 = scmp.eq.s32.totalorder %s17, 1
      %p108 = por %p106, %p107
      %p110 = scmp.ne.s32.totalorder %s93, %s109
      %p111 = scmp.eq.s32.totalorder %s17, 0
      %p112 = por %p110, %p111
      %p113 = scmp.le.s32.totalorder 1, %s11
      %p114 = scmp.lt.s32.totalorder %s11, 3
      %p115 = pnand %p113, %p114
      %p116 = pneg %p115
      // Predicated region
      $region9: #{tpu_custom_call.1} parent=5 // pred_check
        _
      $region10: #{tpu_custom_call.1} parent=5 // pred_check_branch
        %118 = sbr.rel (%p115) target = $region12
      $region11: #{tpu_custom_call.1} parent=5 // pred_region
        %s119 = ssub.s32 %s11, 1
      $region12: #{tpu_custom_call.1} parent=5 // pred_fallthru
        _
      %p120 = scmp.lt.s32.totalorder %s11, 2
      // Predicated region
      $region13: #{tpu_custom_call.1} parent=5 // pred_check
        %p121 = pneg %p120
      $region14: #{tpu_custom_call.1} parent=5 // pred_check_branch
        %123 = sbr.rel (%p121) target = $region16
      $region15: #{tpu_custom_call.1} parent=5 // pred_region
        // Predicated region
        $region17: #{tpu_custom_call.1} parent=15 // pred_check
          %p124 = pneg %p45
        $region18: #{tpu_custom_call.1} parent=15 // pred_check_branch
          %126 = sbr.rel (%p124) target = $region20
        $region19: #{tpu_custom_call.1} parent=15 // pred_region
          %s127 = smul.u32 2, %s19
          %p128 = scmp.lt.s32.totalorder %s18, 1
          %s129 = scalar_select %p128, %s18, 1
          %p130 = scmp.lt.s32.totalorder %s127, 1
          %s131 = scalar_select %p130, %s127, 1
          %s132 = smul.addr %s129, 2
          %s133 = sadd.s32 %s131, %s132
          %s134 = smul.addr %s133, 4
          %s135 = scalar_lea.vmem %s0, %s134
          %s136 = smul.u32 2, %s19
        $region20: #{tpu_custom_call.1} parent=15 // pred_fallthru
          _
        // Predicated region
        $region21: #{tpu_custom_call.1} parent=15 // pred_check
          %p137 = pneg %p71
        $region22: #{tpu_custom_call.1} parent=15 // pred_check_branch
          %139 = sbr.rel (%p137) target = $region24
        $region23: #{tpu_custom_call.1} parent=15 // pred_region
          %p140 = scmp.lt.s32.totalorder %s18, 1
          %s141 = scalar_select %p140, %s18, 1
          %s142 = smul.addr %s141, 8
          %s143 = scalar_lea.vmem %s1, %s142
        $region24: #{tpu_custom_call.1} parent=15 // pred_fallthru
          _
      $region16: #{tpu_custom_call.1} parent=5 // pred_fallthru
        _
      %p144 = scmp.le.s32.totalorder 1, %s11
      %p145 = scmp.lt.s32.totalorder %s11, 3
      %p146 = pnand %p144, %p145
      %p147 = pneg %p146
      // Predicated region
      $region25: #{tpu_custom_call.1} parent=5 // pred_check
        _
      $region26: #{tpu_custom_call.1} parent=5 // pred_check_branch
        %149 = sbr.rel (%p146) target = $region28
      $region27: #{tpu_custom_call.1} parent=5 // pred_region
        %s150 = ssub.s32 %s11, 1
        %s151 = smul.u32 2, %s21
        %p152 = scmp.lt.s32.totalorder %s20, 1
        %s153 = scalar_select %p152, %s20, 1
        %p154 = scmp.lt.s32.totalorder %s151, 1
        %s155 = scalar_select %p154, %s151, 1
        %s156 = smul.addr %s153, 2
        %s157 = sadd.s32 %s155, %s156
        %s158 = smul.addr %s157, 4
        %s159 = scalar_lea.vmem %s0, %s158
        %p160 = pneg %p51
        %p161 = pneg %p48
        %p162 = scmp.lt.s32.totalorder %s20, 1
        %s163 = scalar_select %p162, %s20, 1
        %s164 = smul.addr %s163, 8
        %s165 = scalar_lea.vmem %s1, %s164
        %p166 = pneg %p77
        %p167 = pneg %p74
        %p168 = pneg %p105
        %p169 = pneg %p102
        %s170 = sand.u32 %s92, 1
        %s171 = scalar_lea.sflag [#allocation3], %s170
        %s172 = sand.u32 %s92, 1
        %s173 = smul.addr %s172, 16
        %s174 = scalar_lea.vmem [#allocation2], %s173
        %s175 = smul.u32 2, %s21
        %p176 = scmp.lt.s32.totalorder %s20, 1
        %s177 = scalar_select %p176, %s20, 1
        %p178 = scmp.lt.s32.totalorder %s175, 1
        %s179 = scalar_select %p178, %s175, 1
        %s180 = smul.addr %s177, 2
        %s181 = sadd.s32 %s179, %s180
        %s182 = smul.addr %s181, 4
        %s183 = scalar_lea.vmem %s0, %s182
        %s184 = smul.u32 2, %s21
        %p185 = scmp.lt.s32.totalorder %s20, 1
        %s186 = scalar_select %p185, %s20, 1
        %s187 = smul.addr %s186, 8
        %s188 = scalar_lea.vmem %s1, %s187
        %s189 = smul.u32 2, %s21
        %v190 = vld [vmem:[%s188] sm:$0xff]
        %v191 = vld [vmem:[%s183] sm:$0xff]
        %v193 = vcombine.high %v191, %v191
        %vm194 = vcmask 31744
        %v196 = vsel %vm194, %v190, 0
        %vm198 = vcmask 1043456
        %v199 = vsel %vm198, %v191, 0
        %v201 = vsel %vm198, %v193, 0
        %203 = vmatprep.subr.mxu0 %v201
        %204 = vmatpush1.msra.mxu0 %v199
        %205 = vmatprep.subr.mxu0 0.0
        %206 = vmatpush1.msra.mxu0 0.0
        %207 = vmatprep.subr.mxu0 0.0
        %208 = vmatpush1.msra.mxu0 0.0
        %209 = vmatprep.subr.mxu0 0.0
        %210 = vmatpush1.msra.mxu0 0.0
        %211 = vmatprep.subr.mxu0 0.0
        %212 = vmatpush1.msra.mxu0 0.0
        %213 = vmatprep.subr.mxu0 0.0
        %214 = vmatpush1.msra.mxu0 0.0
        %215 = vmatprep.subr.mxu0 0.0
        %216 = vmatpush1.msra.mxu0 0.0
        %217 = vmatprep.subr.mxu0 0.0
        %218 = vmatpush1.msra.mxu0 0.0
        %219 = vmatprep.subr.mxu0 0.0
        %220 = vmatpush1.msra.mxu0 0.0
        %221 = vmatprep.subr.mxu0 0.0
        %222 = vmatpush1.msra.mxu0 0.0
        %223 = vmatprep.subr.mxu0 0.0
        %224 = vmatpush1.msra.mxu0 0.0
        %225 = vmatprep.subr.mxu0 0.0
        %226 = vmatpush1.msra.mxu0 0.0
        %227 = vmatprep.subr.mxu0 0.0
        %228 = vmatpush1.msra.mxu0 0.0
        %229 = vmatprep.subr.mxu0 0.0
        %230 = vmatpush1.msra.mxu0 0.0
        %231 = vmatprep.subr.mxu0 0.0
        %232 = vmatpush1.msra.mxu0 0.0
        %233 = vmatprep.subr.mxu0 0.0
        %234 = vmatpush1.msra.mxu0 0.0
        %235 = vmatprep.subr.mxu0 0.0
        %236 = vmatpush1.msra.mxu0 0.0
        %237 = vmatprep.subr.mxu0 0.0
        %238 = vmatpush1.msra.mxu0 0.0
        %239 = vmatprep.subr.mxu0 0.0
        %240 = vmatpush1.msra.mxu0 0.0
        %241 = vmatprep.subr.mxu0 0.0
        %242 = vmatpush1.msra.mxu0 0.0
        %243 = vmatprep.subr.mxu0 0.0
        %244 = vmatpush1.msra.mxu0 0.0
        %245 = vmatprep.subr.mxu0 0.0
        %246 = vmatpush1.msra.mxu0 0.0
        %247 = vmatprep.subr.mxu0 0.0
        %248 = vmatpush1.msra.mxu0 0.0
        %249 = vmatprep.subr.mxu0 0.0
        %250 = vmatpush1.msra.mxu0 0.0
        %251 = vmatprep.subr.mxu0 0.0
        %252 = vmatpush1.msra.mxu0 0.0
        %253 = vmatprep.subr.mxu0 0.0
        %254 = vmatpush1.msra.mxu0 0.0
        %255 = vmatprep.subr.mxu0 0.0
        %256 = vmatpush1.msra.mxu0 0.0
        %257 = vmatprep.subr.mxu0 0.0
        %258 = vmatpush1.msra.mxu0 0.0
        %259 = vmatprep.subr.mxu0 0.0
        %260 = vmatpush1.msra.mxu0 0.0
        %261 = vmatprep.subr.mxu0 0.0
        %262 = vmatpush1.msra.mxu0 0.0
        %263 = vmatprep.subr.mxu0 0.0
        %264 = vmatpush1.msra.mxu0 0.0
        %265 = vmatprep.subr.mxu0 0.0
        %266 = vmatpush1.msra.mxu0 0.0
        %267 = vmatprep.mubr.f32.mxu0 0.0
        %268 = vmatmul.mubr.f32.gmra.mrb[0].mxu0 %v196
        %v269 = vpop.f32.mrb[0].mxu0
        %v270 = vadd.f32 0.0, %v269
        %v271 = vpop.f32.mrb[0].mxu0
        %v272 = vadd.f32 0.0, %v271
        %273 = vdwg.mxu0
        %274 = vst [vmem:[%s174] sm:$0xff] %v270
        %275 = vst [vmem:[%s174 + $0x8] sm:$0xff] %v272
        %s276 = sand.u32 %s92, 1
        %s277 = scalar_lea.sflag [#allocation3], %s276
        %s278 = sand.u32 %s92, 1
        %s279 = smul.addr %s278, 16
        %s280 = scalar_lea.vmem [#allocation2], %s279
        // Predicated region
        $region29: #{tpu_custom_call.1} parent=27 // pred_check
          %p281 = pneg %p102
        $region30: #{tpu_custom_call.1} parent=27 // pred_check_branch
          %283 = sbr.rel (%p281) target = $region32
        $region31: #{tpu_custom_call.1} parent=27 // pred_region
          %s284 = smul.u32 2, %s21
          %s286 = ssub.s32 256, 256
          %287 = vsyncadd %s277, %s286
          %s288 = smul.addr %s20, 2
          %s289 = sadd.s32 %s284, %s288
          %s290 = smul.addr %s289, 128
          %s291 = scalar_lea.hbm %s2, %s290
          %s293 = sshll.u32 %s280, 4
          %s294 = int_to_ptr.vmem [resolvable:$true] %s293
          %296 = dma.vmem_to_hbm [thread:$0]  %s294, 256, %s291, %s277
        $region32: #{tpu_custom_call.1} parent=27 // pred_fallthru
          _
      $region28: #{tpu_custom_call.1} parent=5 // pred_fallthru
        _
      %p297 = scmp.le.s32.totalorder 2, %s11
      // Predicated region
      $region33: #{tpu_custom_call.1} parent=5 // pred_check
        %p298 = pneg %p297
      $region34: #{tpu_custom_call.1} parent=5 // pred_check_branch
        %300 = sbr.rel (%p298) target = $region36
      $region35: #{tpu_custom_call.1} parent=5 // pred_region
        %s301 = ssub.s32 %s11, 2
        // Predicated region
        $region37: #{tpu_custom_call.1} parent=35 // pred_check
          %p302 = pneg %p108
        $region38: #{tpu_custom_call.1} parent=35 // pred_check_branch
          %304 = sbr.rel (%p302) target = $region40
        $region39: #{tpu_custom_call.1} parent=35 // pred_region
          %s305 = sand.u32 %s93, 1
          %s306 = scalar_lea.sflag [#allocation3], %s305
          %s307 = sand.u32 %s93, 1
          %s308 = smul.addr %s307, 16
          %s309 = scalar_lea.vmem [#allocation2], %s308
          %310 = dma.done %s306, 256
        $region40: #{tpu_custom_call.1} parent=35 // pred_fallthru
          _
      $region36: #{tpu_custom_call.1} parent=5 // pred_fallthru
        _
    $region6: #{tpu_custom_call.1} parent=1 // loop_footer
      %s15 = sadd.s32 1, %s11
    $region7: #{tpu_custom_call.1} parent=1 // loop_footer_branch
      %10 = sbr.rel target = $region3
    $region8: #{tpu_custom_call.1} parent=1 // loop_exit
      _
    %311 = vsyncpa [#allocation3], 1
    %s312 = scalar_lea.sflag [#allocation3], 1
    %313 = vsyncpa %s312, 1

</llo_original>
